<compile_context>
chip_gen: v5e
topology: v5e:2x2
jax: 0.10.0
libtpu: 0.0.40
codegen_flags: <defaults>
</compile_context>

<pallas_src>
import functools

import jax
import jax.numpy as jnp
from jax.experimental import pallas as pl
from jax.experimental.pallas import tpu as pltpu

EPS = 1e-5  # PyTorch BatchNorm2d default eps


# --------------------- generation-aware VMEM budget ------------------------ #
def _vmem_budget_bytes():
    """~70% of the chip's VMEM (128 MiB on v5e/v6e, 64 MiB on v7x), capped at
    100 MiB; falls back to a v7x-safe 44 MiB if the query is unavailable."""
    cap = 64 << 20
    try:
        cap = int(getattr(pltpu.get_tpu_info(), "vmem_capacity_bytes", cap))
    except Exception:
        pass
    return max(32 << 20, min(int(cap * 0.7), 100 << 20))


_VMEM_BUDGET = _vmem_budget_bytes()


# ----------------------------- Pallas kernel ------------------------------ #
def res_block_kernel(x_ref, wb1_ref, t1_ref, wb2_ref, t2_ref, o_ref):
    """x:(1, Cin, th, W)   wb1:(Cin, W, 2*W*Cout)   t1:(1, 2*W*Cout)
       wb2:(W*Cout, W*Cout)  t2:(1, W*Cout)          o:(1, th, W*Cout)"""
    WCo = o_ref.shape[-1]        # W*Cout (lane-dense, multiple of 128)
    Cin = wb1_ref.shape[0]

    # conv1 + shortcut fused: one MXU matmul per input channel, accumulated in
    # f32.  x arrives in native NCHW layout; the (c,w)->(w,c) shuffle is baked
    # into the band weights, so no in-kernel transpose / relayout is needed.
    z = jnp.dot(x_ref[0, 0], wb1_ref[0], preferred_element_type=jnp.float32)
    for c in range(1, Cin):
        z += jnp.dot(x_ref[0, c], wb1_ref[c], preferred_element_type=jnp.float32)
    z += t1_ref[...]                          # conv bias + BN shift (folded)

    out1 = jnp.maximum(z[:, :WCo], 0.0)       # ReLU(BN1(conv1(x)))  (dropout = id, eval)
    y = out1 + z[:, WCo:]                     # + BN_s(conv_s(x))    (first residual add)

    # conv2 + BN2 as one banded matmul on the lane-dense y (zero padding baked
    # into the band, so the intermediate never needs re-padding).
    z2 = jnp.dot(y.astype(wb2_ref.dtype), wb2_ref[...],
                 preferred_element_type=jnp.float32) + t2_ref[...]
    out2 = jnp.maximum(z2, 0.0)               # ReLU(BN2(conv2(y)))

    o_ref[0] = (out2 + y).astype(o_ref.dtype)    # second residual add


# ------------------------------ weight prep -------------------------------- #
def _scale_shift(b, g, be, m, v):
    """Fold conv bias + eval-mode BatchNorm into per-channel scale/shift."""
    scale = g / jnp.sqrt(v + EPS)
    return scale, (b - m) * scale + be


def _kxio(w):
    """PyTorch conv weight (Cout, Cin, 1, K) -> (K, Cin, Cout)."""
    return jnp.transpose(w[:, :, 0, :], (2, 1, 0))


def _taps(w_kxio, W, pad):
    """(W_in, W_out, Cin, Cout) tap tensor with zero padding baked in."""
    K = w_kxio.shape[0]
    wi = jnp.arange(W)[:, None]                # input spatial position
    wo = jnp.arange(W)[None, :]                # output spatial position
    k = wi - wo + pad                          # tap index; zero outside [0, K)
    valid = (k >= 0) & (k < K)
    return jnp.where(valid[:, :, None, None], w_kxio[jnp.clip(k, 0, K - 1)], 0.0)


def _band_per_channel(w_kxio, W, pad):
    """Per-input-channel band (Cin, W, W*Cout): consumes NCHW rows directly."""
    _, Ci, Co = w_kxio.shape
    return jnp.transpose(_taps(w_kxio, W, pad), (2, 0, 1, 3)).reshape(Ci, W, W * Co)


def _band_dense(w_kxio, W, pad):
    """Dense band (W*Cin, W*Cout) for an already lane-dense (w, c) input."""
    _, Ci, Co = w_kxio.shape
    return jnp.transpose(_taps(w_kxio, W, pad), (0, 2, 1, 3)).reshape(W * Ci, W * Co)


def _pick_th(N, H, row_in_bytes, row_out_bytes, row_f32_bytes, weight_bytes,
             budget, sub):
    """H-tile: largest sublane-granular tile fitting the VMEM budget, with at
    least 2 total grid steps whenever possible (v7x megacore)."""
    per_row = 2 * row_in_bytes + 2 * row_out_bytes + 6 * row_f32_bytes
    avail = max(per_row, budget - weight_bytes - (4 << 20))
    cap = max(1, avail // per_row)
    if cap >= H:
        th = H
    else:
        th = min(H, max(sub, (cap // sub) * sub))
    if N == 1 and th >= H and H >= 2 * sub:     # keep >=2 grid steps when N==1
        th = ((H + 2 * sub - 1) // (2 * sub)) * sub
    return int(th)


# ------------------------------ JAX wrapper -------------------------------- #
@functools.partial(jax.jit, static_argnames=("dot_dtype", "out_dtype"))
def residual_conv2d_block(x_nchw, params, dot_dtype=jnp.bfloat16, out_dtype=None):
    N, Cin, H, W = x_nchw.shape
    Cout, _, _, K = params["w1"].shape
    P = K // 2
    WCo = W * Cout
    dot_dtype = jnp.dtype(dot_dtype)
    out_dtype = jnp.dtype(out_dtype if out_dtype is not None else x_nchw.dtype)

    # ---- fold BN (eval mode) into the conv weights / a per-lane shift ----
    s1, t1 = _scale_shift(params["b1"], params["g1"], params["be1"], params["m1"], params["v1"])
    ss, ts = _scale_shift(params["bs"], params["gs"], params["bes"], params["ms"], params["vs"])
    s2, t2 = _scale_shift(params["b2"], params["g2"], params["be2"], params["m2"], params["v2"])

    w1 = _kxio(params["w1"]) * s1[None, None, :]
    ws = _kxio(params["ws"]) * ss[None, None, :]
    w2 = _kxio(params["w2"]) * s2[None, None, :]

    # conv1 + shortcut fused along the output axis; per-input-channel bands so
    # the kernel consumes NCHW x directly (no wrapper transpose of x).
    wb1 = jnp.concatenate([_band_per_channel(w1, W, P),
                           _band_per_channel(ws, W, P)], axis=2)       # (Cin, W, 2*WCo)
    t1f = jnp.concatenate([jnp.tile(t1, W), jnp.tile(ts, W)])[None, :]  # (1, 2*WCo)
    wb2 = _band_dense(w2, W, P)                                         # (WCo, WCo)
    t2f = jnp.tile(t2, W)[None, :]                                      # (1, WCo)

    wb1 = wb1.astype(dot_dtype)
    wb2 = wb2.astype(dot_dtype)
    x = x_nchw.astype(dot_dtype)            # dtype only; layout stays NCHW

    in_b = dot_dtype.itemsize
    out_b = out_dtype.itemsize
    sub = 16 if in_b < 4 else 8             # sublane granularity per dtype
    weight_bytes = (wb1.size + wb2.size) * in_b + (t1f.size + t2f.size) * 4
    th = _pick_th(N, H, Cin * W * in_b, WCo * out_b, WCo * 4,
                  weight_bytes, _VMEM_BUDGET, sub)
    grid = (N, pl.cdiv(H, th))

    flops = 2 * N * H * (2 * Cin * W * WCo + WCo * WCo)
    bytes_accessed = N * Cin * H * W * in_b + N * H * WCo * out_b + weight_bytes

    full2 = lambda n, h: (0, 0)
    full3 = lambda n, h: (0, 0, 0)
    out = pl.pallas_call(
        res_block_kernel,
        out_shape=jax.ShapeDtypeStruct((N, H, WCo), out_dtype),
        grid=grid,
        in_specs=[
            pl.BlockSpec((1, Cin, th, W), lambda n, h: (n, 0, h, 0)),
            # grid-invariant weights: single-buffered (constant index_map)
            pl.BlockSpec((Cin, W, 2 * WCo), full3, pipeline_mode=pl.Buffered(1)),
            pl.BlockSpec((1, 2 * WCo), full2, pipeline_mode=pl.Buffered(1)),
            pl.BlockSpec((WCo, WCo), full2, pipeline_mode=pl.Buffered(1)),
            pl.BlockSpec((1, WCo), full2, pipeline_mode=pl.Buffered(1)),
        ],
        out_specs=pl.BlockSpec((1, th, WCo), lambda n, h: (n, h, 0)),
        compiler_params=pltpu.CompilerParams(
            dimension_semantics=("parallel", "parallel"),
            vmem_limit_bytes=_VMEM_BUDGET),
        cost_estimate=pl.CostEstimate(flops=flops, transcendentals=0,
                                      bytes_accessed=bytes_accessed),
    )(x, wb1, t1f, wb2, t2f)

    # lane-dense rows -> NCHW (single output permute; see TODO in header).
    return jnp.transpose(out.reshape(N, H, W, Cout), (0, 3, 1, 2))


# ------------------------- plain-JAX reference ----------------------------- #
def reference(x, p):
    def conv(x, w, b):
        y = jax.lax.conv_general_dilated(
            x, w, window_strides=(1, 1), padding=((0, 0), (2, 2)),
            dimension_numbers=("NCHW", "OIHW", "NCHW"))
        return y + b[None, :, None, None]

    def bn(y, g, be, m, v):
        sh = lambda a: a[None, :, None, None]
        return (y - sh(m)) / jnp.sqrt(sh(v) + EPS) * sh(g) + sh(be)

    out = jax.nn.relu(bn(conv(x, p["w1"], p["b1"]), p["g1"], p["be1"], p["m1"], p["v1"]))
    sc = bn(conv(x, p["ws"], p["bs"]), p["gs"], p["bes"], p["ms"], p["vs"])
    out = out + sc
    identity = out
    out = jax.nn.relu(bn(conv(out, p["w2"], p["b2"]), p["g2"], p["be2"], p["m2"], p["v2"]))
    return out + identity


# --------------------------------- main ------------------------------------ #
if __name__ == "__main__":
    N, Cin, Cout, H, W = 2, 4, 8, 16, 16
    key = jax.random.PRNGKey(0)
    ks = jax.random.split(key, 20)
    u = lambda k, s, lo, hi: jax.random.uniform(k, s, jnp.float32, lo, hi)

    params = {
        # conv1 / shortcut / conv2 weights & biases (PyTorch shapes (O, I, 1, 5))
        "w1": u(ks[0], (Cout, Cin, 1, 5), -0.3, 0.3),  "b1": u(ks[1], (Cout,), -0.1, 0.1),
        "ws": u(ks[2], (Cout, Cin, 1, 5), -0.3, 0.3),  "bs": u(ks[3], (Cout,), -0.1, 0.1),
        "w2": u(ks[4], (Cout, Cout, 1, 5), -0.3, 0.3), "b2": u(ks[5], (Cout,), -0.1, 0.1),
        # BatchNorm2d params (eval mode: running stats)
        "g1": u(ks[6], (Cout,), 0.5, 1.5), "be1": u(ks[7], (Cout,), -0.2, 0.2),
        "m1": u(ks[8], (Cout,), -0.1, 0.1), "v1": u(ks[9], (Cout,), 0.5, 1.5),
        "gs": u(ks[10], (Cout,), 0.5, 1.5), "bes": u(ks[11], (Cout,), -0.2, 0.2),
        "ms": u(ks[12], (Cout,), -0.1, 0.1), "vs": u(ks[13], (Cout,), 0.5, 1.5),
        "g2": u(ks[14], (Cout,), 0.5, 1.5), "be2": u(ks[15], (Cout,), -0.2, 0.2),
        "m2": u(ks[16], (Cout,), -0.1, 0.1), "v2": u(ks[17], (Cout,), 0.5, 1.5),
    }
    x = jax.random.normal(ks[18], (N, Cin, H, W), jnp.float32)

    # TODO(synk): BatchNorm/Dropout are implemented in inference mode (training-mode
    # batch statistics / random dropout masks are not part of this kernel).
    ref = jax.block_until_ready(reference(x, params))

    # f32 accuracy path (validates numerics against the reference).
    out = jax.block_until_ready(residual_conv2d_block(x, params, dot_dtype=jnp.float32))
    assert out.shape == (N, Cout, H, W)
    assert jnp.allclose(out, ref, atol=1e-4, rtol=1e-4), float(jnp.max(jnp.abs(out - ref)))

    # Default production path: bf16 MXU inputs + bf16 output (loose sanity check).
    out_bf16 = jax.block_until_ready(
        residual_conv2d_block(x, params, dot_dtype=jnp.bfloat16, out_dtype=jnp.bfloat16))
    assert out_bf16.shape == (N, Cout, H, W)
    assert bool(jnp.isfinite(out_bf16.astype(jnp.float32)).all())
    assert jnp.allclose(out_bf16.astype(jnp.float32), ref, atol=0.5, rtol=0.5)

    print("KERNEL_OK")
</pallas_src>

<mosaic_0001>
module attributes {stable_mosaic.version = 11 : i64} {
  func.func @res_block_kernel(%arg0: i32, %arg1: i32, %arg2: memref<1x4x16x16xf32, #tpu.memory_space<vmem>>, %arg3: memref<4x16x256xf32, #tpu.memory_space<vmem>>, %arg4: memref<1x256xf32, #tpu.memory_space<vmem>>, %arg5: memref<128x128xf32, #tpu.memory_space<vmem>>, %arg6: memref<1x128xf32, #tpu.memory_space<vmem>>, %arg7: memref<1x16x128xf32, #tpu.memory_space<vmem>>) attributes {dimension_semantics = [#tpu.dimension_semantics<parallel>, #tpu.dimension_semantics<parallel>], iteration_bounds = array<i64: 2, 1>, scalar_prefetch = 0 : i64, scratch_operands = 0 : i64, tpu.core_type = #tpu.core_type<tc>, window_params = [{transform_indices = @transform_0, window_bounds = array<i64: 1, 4, 16, 16>}, {pipeline_mode = #tpu.pipeline_mode<synchronous>, transform_indices = @transform_1, window_bounds = array<i64: 4, 16, 256>}, {pipeline_mode = #tpu.pipeline_mode<synchronous>, transform_indices = @transform_2, window_bounds = array<i64: 1, 256>}, {pipeline_mode = #tpu.pipeline_mode<synchronous>, transform_indices = @transform_3, window_bounds = array<i64: 128, 128>}, {pipeline_mode = #tpu.pipeline_mode<synchronous>, transform_indices = @transform_4, window_bounds = array<i64: 1, 128>}, {transform_indices = @transform_5, window_bounds = array<i64: 1, 16, 128>}]} {
    %c0 = arith.constant 0 : index
    %c0_0 = arith.constant 0 : index
    %c0_1 = arith.constant 0 : index
    %c0_2 = arith.constant 0 : index
    %0 = vector.load %arg2[%c0, %c0_0, %c0_1, %c0_2] : memref<1x4x16x16xf32, #tpu.memory_space<vmem>>, vector<1x1x16x16xf32>
    %1 = vector.shape_cast %0 : vector<1x1x16x16xf32> to vector<16x16xf32>
    %c0_3 = arith.constant 0 : index
    %c0_4 = arith.constant 0 : index
    %c0_5 = arith.constant 0 : index
    %2 = vector.load %arg3[%c0_3, %c0_4, %c0_5] : memref<4x16x256xf32, #tpu.memory_space<vmem>>, vector<1x16x256xf32>
    %3 = vector.shape_cast %2 : vector<1x16x256xf32> to vector<16x256xf32>
    %cst = arith.constant dense<0.000000e+00> : vector<16x256xf32>
    %4 = tpu.matmul %1, %3, %cst {dimension_numbers = #tpu.dot_dimension_numbers<[1], [0], [0], [1], [0, 0, 1, 1], [], []>} : vector<16x16xf32>, vector<16x256xf32>, vector<16x256xf32> -> vector<16x256xf32>
    %c0_6 = arith.constant 0 : index
    %c1 = arith.constant 1 : index
    %c0_7 = arith.constant 0 : index
    %c0_8 = arith.constant 0 : index
    %5 = vector.load %arg2[%c0_6, %c1, %c0_7, %c0_8] : memref<1x4x16x16xf32, #tpu.memory_space<vmem>>, vector<1x1x16x16xf32>
    %6 = vector.shape_cast %5 : vector<1x1x16x16xf32> to vector<16x16xf32>
    %c1_9 = arith.constant 1 : index
    %c0_10 = arith.constant 0 : index
    %c0_11 = arith.constant 0 : index
    %7 = vector.load %arg3[%c1_9, %c0_10, %c0_11] : memref<4x16x256xf32, #tpu.memory_space<vmem>>, vector<1x16x256xf32>
    %8 = vector.shape_cast %7 : vector<1x16x256xf32> to vector<16x256xf32>
    %cst_12 = arith.constant dense<0.000000e+00> : vector<16x256xf32>
    %9 = tpu.matmul %6, %8, %cst_12 {dimension_numbers = #tpu.dot_dimension_numbers<[1], [0], [0], [1], [0, 0, 1, 1], [], []>} : vector<16x16xf32>, vector<16x256xf32>, vector<16x256xf32> -> vector<16x256xf32>
    %10 = arith.addf %4, %9 : vector<16x256xf32>
    %c0_13 = arith.constant 0 : index
    %c2 = arith.constant 2 : index
    %c0_14 = arith.constant 0 : index
    %c0_15 = arith.constant 0 : index
    %11 = vector.load %arg2[%c0_13, %c2, %c0_14, %c0_15] : memref<1x4x16x16xf32, #tpu.memory_space<vmem>>, vector<1x1x16x16xf32>
    %12 = vector.shape_cast %11 : vector<1x1x16x16xf32> to vector<16x16xf32>
    %c2_16 = arith.constant 2 : index
    %c0_17 = arith.constant 0 : index
    %c0_18 = arith.constant 0 : index
    %13 = vector.load %arg3[%c2_16, %c0_17, %c0_18] : memref<4x16x256xf32, #tpu.memory_space<vmem>>, vector<1x16x256xf32>
    %14 = vector.shape_cast %13 : vector<1x16x256xf32> to vector<16x256xf32>
    %cst_19 = arith.constant dense<0.000000e+00> : vector<16x256xf32>
    %15 = tpu.matmul %12, %14, %cst_19 {dimension_numbers = #tpu.dot_dimension_numbers<[1], [0], [0], [1], [0, 0, 1, 1], [], []>} : vector<16x16xf32>, vector<16x256xf32>, vector<16x256xf32> -> vector<16x256xf32>
    %16 = arith.addf %10, %15 : vector<16x256xf32>
    %c0_20 = arith.constant 0 : index
    %c3 = arith.constant 3 : index
    %c0_21 = arith.constant 0 : index
    %c0_22 = arith.constant 0 : index
    %17 = vector.load %arg2[%c0_20, %c3, %c0_21, %c0_22] : memref<1x4x16x16xf32, #tpu.memory_space<vmem>>, vector<1x1x16x16xf32>
    %18 = vector.shape_cast %17 : vector<1x1x16x16xf32> to vector<16x16xf32>
    %c3_23 = arith.constant 3 : index
    %c0_24 = arith.constant 0 : index
    %c0_25 = arith.constant 0 : index
    %19 = vector.load %arg3[%c3_23, %c0_24, %c0_25] : memref<4x16x256xf32, #tpu.memory_space<vmem>>, vector<1x16x256xf32>
    %20 = vector.shape_cast %19 : vector<1x16x256xf32> to vector<16x256xf32>
    %cst_26 = arith.constant dense<0.000000e+00> : vector<16x256xf32>
    %21 = tpu.matmul %18, %20, %cst_26 {dimension_numbers = #tpu.dot_dimension_numbers<[1], [0], [0], [1], [0, 0, 1, 1], [], []>} : vector<16x16xf32>, vector<16x256xf32>, vector<16x256xf32> -> vector<16x256xf32>
    %22 = arith.addf %16, %21 : vector<16x256xf32>
    %c0_27 = arith.constant 0 : index
    %c0_28 = arith.constant 0 : index
    %23 = vector.load %arg4[%c0_27, %c0_28] : memref<1x256xf32, #tpu.memory_space<vmem>>, vector<1x256xf32>
    %24 = vector.broadcast %23 : vector<1x256xf32> to vector<16x256xf32>
    %25 = arith.addf %22, %24 : vector<16x256xf32>
    %26 = vector.extract_strided_slice %25 {offsets = [0, 0], sizes = [16, 128], strides = [1, 1]} : vector<16x256xf32> to vector<16x128xf32>
    %cst_29 = arith.constant 0.000000e+00 : f32
    %27 = vector.broadcast %cst_29 : f32 to vector<16x128xf32>
    %28 = arith.maximumf %26, %27 : vector<16x128xf32>
    %29 = vector.extract_strided_slice %25 {offsets = [0, 128], sizes = [16, 128], strides = [1, 1]} : vector<16x256xf32> to vector<16x128xf32>
    %30 = arith.addf %28, %29 : vector<16x128xf32>
    %c0_30 = arith.constant 0 : index
    %c0_31 = arith.constant 0 : index
    %31 = vector.load %arg5[%c0_30, %c0_31] : memref<128x128xf32, #tpu.memory_space<vmem>>, vector<128x128xf32>
    %cst_32 = arith.constant dense<0.000000e+00> : vector<16x128xf32>
    %32 = tpu.matmul %30, %31, %cst_32 {dimension_numbers = #tpu.dot_dimension_numbers<[1], [0], [0], [1], [0, 0, 1, 1], [], []>} : vector<16x128xf32>, vector<128x128xf32>, vector<16x128xf32> -> vector<16x128xf32>
    %c0_33 = arith.constant 0 : index
    %c0_34 = arith.constant 0 : index
    %33 = vector.load %arg6[%c0_33, %c0_34] : memref<1x128xf32, #tpu.memory_space<vmem>>, vector<1x128xf32>
    %34 = vector.broadcast %33 : vector<1x128xf32> to vector<16x128xf32>
    %35 = arith.addf %32, %34 : vector<16x128xf32>
    %cst_35 = arith.constant 0.000000e+00 : f32
    %36 = vector.broadcast %cst_35 : f32 to vector<16x128xf32>
    %37 = arith.maximumf %35, %36 : vector<16x128xf32>
    %38 = arith.addf %37, %30 : vector<16x128xf32>
    %c0_36 = arith.constant 0 : index
    %c0_37 = arith.constant 0 : index
    %c0_38 = arith.constant 0 : index
    %39 = vector.load %arg7[%c0_36, %c0_37, %c0_38] : memref<1x16x128xf32, #tpu.memory_space<vmem>>, vector<1x16x128xf32>
    %40 = vector.shape_cast %39 : vector<1x16x128xf32> to vector<16x128xf32>
    %41 = vector.shape_cast %38 : vector<16x128xf32> to vector<1x16x128xf32>
    tpu.vector_store %arg7[%c0_36, %c0_37, %c0_38], %41 {strides = array<i32>} : memref<1x16x128xf32, #tpu.memory_space<vmem>>, vector<1x16x128xf32>,
    return
  }
  func.func @transform_0(%arg0: i32, %arg1: i32) -> (i32, i32, i32, i32) {
    %c0_i32 = arith.constant 0 : i32
    %c0_i32_0 = arith.constant 0 : i32
    %c0_i32_1 = arith.constant 0 : i32
    return %arg0, %c0_i32, %arg1, %c0_i32_0 : i32, i32, i32, i32
  }
  func.func @transform_1(%arg0: i32, %arg1: i32) -> (i32, i32, i32) {
    %c0_i32 = arith.constant 0 : i32
    %c0_i32_0 = arith.constant 0 : i32
    %c0_i32_1 = arith.constant 0 : i32
    %c0_i32_2 = arith.constant 0 : i32
    return %c0_i32, %c0_i32_0, %c0_i32_1 : i32, i32, i32
  }
  func.func @transform_2(%arg0: i32, %arg1: i32) -> (i32, i32) {
    %c0_i32 = arith.constant 0 : i32
    %c0_i32_0 = arith.constant 0 : i32
    %c0_i32_1 = arith.constant 0 : i32
    return %c0_i32, %c0_i32_0 : i32, i32
  }
  func.func @transform_3(%arg0: i32, %arg1: i32) -> (i32, i32) {
    %c0_i32 = arith.constant 0 : i32
    %c0_i32_0 = arith.constant 0 : i32
    %c0_i32_1 = arith.constant 0 : i32
    return %c0_i32, %c0_i32_0 : i32, i32
  }
  func.func @transform_4(%arg0: i32, %arg1: i32) -> (i32, i32) {
    %c0_i32 = arith.constant 0 : i32
    %c0_i32_0 = arith.constant 0 : i32
    %c0_i32_1 = arith.constant 0 : i32
    return %c0_i32, %c0_i32_0 : i32, i32
  }
  func.func @transform_5(%arg0: i32, %arg1: i32) -> (i32, i32, i32) {
    %c0_i32 = arith.constant 0 : i32
    %c0_i32_0 = arith.constant 0 : i32
    return %arg0, %arg1, %c0_i32 : i32, i32, i32
  }
}

</mosaic_0001>

<llo_original>
// kernel: tile.23
$region0: #{tile.23}
  #allocation0 [shape = 's32[1]{0}', space=sflag, size = 0x4, scoped, tag = 'scoped memory for tile.23']
  %s0 = inlined_call_operand.vmem [shape: f32[8], index: 0, kind: input, shape index: {}]
  %s1 = inlined_call_operand.vmem [shape: f32[16,8], index: 1, kind: output, shape index: {}]
  // Predicated region
  $region2: #{tile.23} parent=0 // pred_check
    _
  $region3: #{tile.23} parent=0 // pred_check_branch
    %3 = sbr.rel (0) target = $region5
  $region4: #{tile.23} parent=0 // pred_region
    _
  $region5: #{tile.23} parent=0 // pred_fallthru
    _
  %v4 = vld [vmem:[%s0] ss:$0 sm:$0xff]
  %5 = vst [vmem:[%s1] sm:$0xff] %v4
  %s6 = scalar_lea.vmem %s1, 8
  %7 = vst [vmem:[%s6] sm:$0xff] %v4

// kernel: tile.29
$region0: #{tile.29}
  %s0 = inlined_call_operand.vmem [shape: f32[16,8], index: 0, kind: input, shape index: {}]
  %s1 = inlined_call_operand.vmem [shape: f32[1,128], index: 1, kind: output, shape index: {}]
  $region1: #{tile.29} parent=0
    #allocation0 [shape = 'u8[4096]{0}', space=vmem, size = 0x1000, scoped, tag = 'scoped mem for output reshape']
    %v2 = vld [vmem:[%s0] sm:$0x1]
    %vm3 = vcmask 64512
    %4 = vst.msk [vmem:[#allocation0] sm:$0x1] %vm3, %v2
    %s5 = scalar_lea.vmem %s0, 15
    %v6 = vld [vmem:[%s5] sm:$0x1]
    %7 = vrot.lane.b32.xlu0 %v6, 120
    %v8 = vpop.permute.xlu0 %7
    %vm9 = vcmask 1048512
    %10 = vst.msk [vmem:[#allocation0] sm:$0x1] %vm9, %v8
    %s11 = scalar_lea.vmem %s0, 14
    %v12 = vld [vmem:[%s11] sm:$0x1]
    %13 = vrot.lane.b32.xlu0 %v12, 112
    %v14 = vpop.permute.xlu0 %13
    %vm15 = vcmask 982912
    %16 = vst.msk [vmem:[#allocation0] sm:$0x1] %vm15, %v14
    %s17 = scalar_lea.vmem %s0, 13
    %v18 = vld [vmem:[%s17] sm:$0x1]
    %19 = vrot.lane.b32.xlu0 %v18, 104
    %v20 = vpop.permute.xlu0 %19
    %vm21 = vcmask 917312
    %22 = vst.msk [vmem:[#allocation0] sm:$0x1] %vm21, %v20
    %s23 = scalar_lea.vmem %s0, 12
    %v24 = vld [vmem:[%s23] sm:$0x1]
    %25 = vrot.lane.b32.xlu0 %v24, 96
    %v26 = vpop.permute.xlu0 %25
    %vm27 = vcmask 851712
    %28 = vst.msk [vmem:[#allocation0] sm:$0x1] %vm27, %v26
    %s29 = scalar_lea.vmem %s0, 11
    %v30 = vld [vmem:[%s29] sm:$0x1]
    %31 = vrot.lane.b32.xlu0 %v30, 88
    %v32 = vpop.permute.xlu0 %31
    %vm33 = vcmask 786112
    %34 = vst.msk [vmem:[#allocation0] sm:$0x1] %vm33, %v32
    %s35 = scalar_lea.vmem %s0, 10
    %v36 = vld [vmem:[%s35] sm:$0x1]
    %37 = vrot.lane.b32.xlu0 %v36, 80
    %v38 = vpop.permute.xlu0 %37
    %vm39 = vcmask 720512
    %40 = vst.msk [vmem:[#allocation0] sm:$0x1] %vm39, %v38
    %s41 = scalar_lea.vmem %s0, 9
    %v42 = vld [vmem:[%s41] sm:$0x1]
    %43 = vrot.lane.b32.xlu0 %v42, 72
    %v44 = vpop.permute.xlu0 %43
    %vm45 = vcmask 654912
    %46 = vst.msk [vmem:[#allocation0] sm:$0x1] %vm45, %v44
    %s47 = scalar_lea.vmem %s0, 8
    %v48 = vld [vmem:[%s47] sm:$0x1]
    %49 = vrot.lane.b32.xlu0 %v48, 64
    %v50 = vpop.permute.xlu0 %49
    %vm51 = vcmask 589312
    %52 = vst.msk [vmem:[#allocation0] sm:$0x1] %vm51, %v50
    %s53 = scalar_lea.vmem %s0, 7
    %v54 = vld [vmem:[%s53] sm:$0x1]
    %55 = vrot.lane.b32.xlu0 %v54, 56
    %v56 = vpop.permute.xlu0 %55
    %vm57 = vcmask 523712
    %58 = vst.msk [vmem:[#allocation0] sm:$0x1] %vm57, %v56
    %s59 = scalar_lea.vmem %s0, 6
    %v60 = vld [vmem:[%s59] sm:$0x1]
    %61 = vrot.lane.b32.xlu0 %v60, 48
    %v62 = vpop.permute.xlu0 %61
    %vm63 = vcmask 458112
    %64 = vst.msk [vmem:[#allocation0] sm:$0x1] %vm63, %v62
    %s65 = scalar_lea.vmem %s0, 5
    %v66 = vld [vmem:[%s65] sm:$0x1]
    %67 = vrot.lane.b32.xlu0 %v66, 40
    %v68 = vpop.permute.xlu0 %67
    %vm69 = vcmask 392512
    %70 = vst.msk [vmem:[#allocation0] sm:$0x1] %vm69, %v68
    %s71 = scalar_lea.vmem %s0, 4
    %v72 = vld [vmem:[%s71] sm:$0x1]
    %73 = vrot.lane.b32.xlu0 %v72, 32
    %v74 = vpop.permute.xlu0 %73
    %vm75 = vcmask 326912
    %76 = vst.msk [vmem:[#allocation0] sm:$0x1] %vm75, %v74
    %s77 = scalar_lea.vmem %s0, 3
    %v78 = vld [vmem:[%s77] sm:$0x1]
    %79 = vrot.lane.b32.xlu0 %v78, 24
    %v80 = vpop.permute.xlu0 %79
    %vm81 = vcmask 261312
    %82 = vst.msk [vmem:[#allocation0] sm:$0x1] %vm81, %v80
    %s83 = scalar_lea.vmem %s0, 2
    %v84 = vld [vmem:[%s83] sm:$0x1]
    %85 = vrot.lane.b32.xlu0 %v84, 16
    %v86 = vpop.permute.xlu0 %85
    %vm87 = vcmask 195712
    %88 = vst.msk [vmem:[#allocation0] sm:$0x1] %vm87, %v86
    %s89 = scalar_lea.vmem %s0, 1
    %v90 = vld [vmem:[%s89] sm:$0x1]
    %91 = vrot.lane.b32.xlu0 %v90, 8
    %v92 = vpop.permute.xlu0 %91
    %vm93 = vcmask 130112
    %94 = vst.msk [vmem:[#allocation0] sm:$0x1] %vm93, %v92
    %s96 = ssub.s32 2, 1
    %v97 = vld [vmem:[#allocation0] sm:%s96]
    %s99 = ssub.s32 2, 1
    %100 = vst [vmem:[%s1] sm:%s99] %v97

// kernel: tile.24
$region0: #{tile.24}
  %s0 = inlined_call_operand.vmem [shape: f32[16,8], index: 0, kind: input, shape index: {}]
  %s1 = inlined_call_operand.vmem [shape: f32[128], index: 1, kind: output, shape index: {}]
  $region1: #{tile.24} parent=0
    #allocation0 [shape = 'u8[4096]{0}', space=vmem, size = 0x1000, scoped, tag = 'scoped mem for output reshape']
    %v2 = vld [vmem:[%s0] sm:$0x1]
    %vm3 = vcmask 64512
    %4 = vst.msk [vmem:[#allocation0] sm:$0x1] %vm3, %v2
    %s5 = scalar_lea.vmem %s0, 15
    %v6 = vld [vmem:[%s5] sm:$0x1]
    %7 = vrot.lane.b32.xlu0 %v6, 120
    %v8 = vpop.permute.xlu0 %7
    %vm9 = vcmask 1048512
    %10 = vst.msk [vmem:[#allocation0] sm:$0x1] %vm9, %v8
    %s11 = scalar_lea.vmem %s0, 14
    %v12 = vld [vmem:[%s11] sm:$0x1]
    %13 = vrot.lane.b32.xlu0 %v12, 112
    %v14 = vpop.permute.xlu0 %13
    %vm15 = vcmask 982912
    %16 = vst.msk [vmem:[#allocation0] sm:$0x1] %vm15, %v14
    %s17 = scalar_lea.vmem %s0, 13
    %v18 = vld [vmem:[%s17] sm:$0x1]
    %19 = vrot.lane.b32.xlu0 %v18, 104
    %v20 = vpop.permute.xlu0 %19
    %vm21 = vcmask 917312
    %22 = vst.msk [vmem:[#allocation0] sm:$0x1] %vm21, %v20
    %s23 = scalar_lea.vmem %s0, 12
    %v24 = vld [vmem:[%s23] sm:$0x1]
    %25 = vrot.lane.b32.xlu0 %v24, 96
    %v26 = vpop.permute.xlu0 %25
    %vm27 = vcmask 851712
    %28 = vst.msk [vmem:[#allocation0] sm:$0x1] %vm27, %v26
    %s29 = scalar_lea.vmem %s0, 11
    %v30 = vld [vmem:[%s29] sm:$0x1]
    %31 = vrot.lane.b32.xlu0 %v30, 88
    %v32 = vpop.permute.xlu0 %31
    %vm33 = vcmask 786112
    %34 = vst.msk [vmem:[#allocation0] sm:$0x1] %vm33, %v32
    %s35 = scalar_lea.vmem %s0, 10
    %v36 = vld [vmem:[%s35] sm:$0x1]
    %37 = vrot.lane.b32.xlu0 %v36, 80
    %v38 = vpop.permute.xlu0 %37
    %vm39 = vcmask 720512
    %40 = vst.msk [vmem:[#allocation0] sm:$0x1] %vm39, %v38
    %s41 = scalar_lea.vmem %s0, 9
    %v42 = vld [vmem:[%s41] sm:$0x1]
    %43 = vrot.lane.b32.xlu0 %v42, 72
    %v44 = vpop.permute.xlu0 %43
    %vm45 = vcmask 654912
    %46 = vst.msk [vmem:[#allocation0] sm:$0x1] %vm45, %v44
    %s47 = scalar_lea.vmem %s0, 8
    %v48 = vld [vmem:[%s47] sm:$0x1]
    %49 = vrot.lane.b32.xlu0 %v48, 64
    %v50 = vpop.permute.xlu0 %49
    %vm51 = vcmask 589312
    %52 = vst.msk [vmem:[#allocation0] sm:$0x1] %vm51, %v50
    %s53 = scalar_lea.vmem %s0, 7
    %v54 = vld [vmem:[%s53] sm:$0x1]
    %55 = vrot.lane.b32.xlu0 %v54, 56
    %v56 = vpop.permute.xlu0 %55
    %vm57 = vcmask 523712
    %58 = vst.msk [vmem:[#allocation0] sm:$0x1] %vm57, %v56
    %s59 = scalar_lea.vmem %s0, 6
    %v60 = vld [vmem:[%s59] sm:$0x1]
    %61 = vrot.lane.b32.xlu0 %v60, 48
    %v62 = vpop.permute.xlu0 %61
    %vm63 = vcmask 458112
    %64 = vst.msk [vmem:[#allocation0] sm:$0x1] %vm63, %v62
    %s65 = scalar_lea.vmem %s0, 5
    %v66 = vld [vmem:[%s65] sm:$0x1]
    %67 = vrot.lane.b32.xlu0 %v66, 40
    %v68 = vpop.permute.xlu0 %67
    %vm69 = vcmask 392512
    %70 = vst.msk [vmem:[#allocation0] sm:$0x1] %vm69, %v68
    %s71 = scalar_lea.vmem %s0, 4
    %v72 = vld [vmem:[%s71] sm:$0x1]
    %73 = vrot.lane.b32.xlu0 %v72, 32
    %v74 = vpop.permute.xlu0 %73
    %vm75 = vcmask 326912
    %76 = vst.msk [vmem:[#allocation0] sm:$0x1] %vm75, %v74
    %s77 = scalar_lea.vmem %s0, 3
    %v78 = vld [vmem:[%s77] sm:$0x1]
    %79 = vrot.lane.b32.xlu0 %v78, 24
    %v80 = vpop.permute.xlu0 %79
    %vm81 = vcmask 261312
    %82 = vst.msk [vmem:[#allocation0] sm:$0x1] %vm81, %v80
    %s83 = scalar_lea.vmem %s0, 2
    %v84 = vld [vmem:[%s83] sm:$0x1]
    %85 = vrot.lane.b32.xlu0 %v84, 16
    %v86 = vpop.permute.xlu0 %85
    %vm87 = vcmask 195712
    %88 = vst.msk [vmem:[#allocation0] sm:$0x1] %vm87, %v86
    %s89 = scalar_lea.vmem %s0, 1
    %v90 = vld [vmem:[%s89] sm:$0x1]
    %91 = vrot.lane.b32.xlu0 %v90, 8
    %v92 = vpop.permute.xlu0 %91
    %vm93 = vcmask 130112
    %94 = vst.msk [vmem:[#allocation0] sm:$0x1] %vm93, %v92
    %s96 = ssub.s32 2, 1
    %v97 = vld [vmem:[#allocation0] sm:%s96]
    %s99 = ssub.s32 2, 1
    %100 = vst [vmem:[%s1] sm:%s99] %v97

// kernel: residual_conv2d_block.1
$region0: #{residual_conv2d_block.1}
  #allocation0 [shape = 'u32[]', space=smem, size = 0x4, offset = 0x4, fixed_abs, tag = 'smem constant byte address 0x4 - core index']
  #allocation1 [shape = 'u32[72,128]{1,0:T(1,128)}', space=vmem, size = 0x9000, scoped, tag = 'internal scratch']
  %s0 = inlined_call_operand.vmem [shape: f32[2,4,16,16], index: 0, kind: input, shape index: {}]
  %s1 = inlined_call_operand.vmem [shape: f32[4,16,256], index: 1, kind: input, shape index: {}]
  %s2 = inlined_call_operand.vmem [shape: f32[1,256], index: 2, kind: input, shape index: {}]
  %s3 = inlined_call_operand.vmem [shape: f32[128,128], index: 3, kind: input, shape index: {}]
  %s4 = inlined_call_operand.vmem [shape: f32[1,128], index: 4, kind: input, shape index: {}]
  %s5 = inlined_call_operand.vmem [shape: f32[2,16,128], index: 5, kind: output, shape index: {}]
  %s6 = sld [smem:[#allocation0]]
  $region53: #{residual_conv2d_block.1} parent=0
    _
  %s8 = ssub.s32 1, %s6
  %s9 = scalar_select 0, %s8, %s6
  loop: start=0, step=1, limit=4
  $region2: #{residual_conv2d_block.1} parent=0 // loop_pre_header
    _
  $region3: #{residual_conv2d_block.1} parent=0 // loop_header
    %s11 = sphi 0, %s15
    %p12 = scmp.ge.s32.totalorder %s11, 4
    %s18 = sphi 0, %s30
    %s19 = sphi 0, %s26
    %s20 = sphi 0, %s18
    %s21 = sphi 0, %s19
    %s22 = sphi 0, %s20
    %s23 = sphi 0, %s21
    %s35 = sphi 0, %s37
    %s38 = sphi 0, %s35
    %s39 = sphi 0, %s38
    %s55 = sphi 0, %s39
    %s59 = sphi 0, %s59
    %s61 = sphi 0, %s59
    %s62 = sphi 0, %s61
    %s76 = sphi 0, %s62
    %s80 = sphi 0, %s80
    %s82 = sphi 0, %s80
    %s83 = sphi 0, %s82
    %s97 = sphi 0, %s83
    %s101 = sphi 0, %s101
    %s103 = sphi 0, %s101
    %s104 = sphi 0, %s103
    %s118 = sphi 0, %s104
    %s122 = sphi 0, %s122
    %s124 = sphi 0, %s122
    %s125 = sphi 0, %s124
    %s139 = sphi 0, %s125
    %s147 = sphi 0, %s149
    %s150 = sphi 0, %s147
    %s151 = sphi 0, %s150
    %s167 = sphi 0, %s151
  $region4: #{residual_conv2d_block.1} parent=0 // loop_header_branch
    %14 = sbr.rel (%p12) target = $region8
  $region5: #{residual_conv2d_block.1} parent=0 // loop_body
    %s16 = ssub.s32 %s11, 1
    %s17 = ssub.s32 %s11, 2
    %s24 = sadd.s32 1, %s19
    %p25 = scmp.ge.s32.totalorder %s24, 1
    %s26 = scalar_select %p25, 0, %s24
    %s27 = sadd.s32 1, %s18
    %s28 = scalar_select %p25, %s27, %s18
    %p29 = scmp.ge.s32.totalorder %s28, 2
    %s30 = scalar_select %p29, 0, %s28
    %s31 = ssub.s32 %s18, %s30
    %s32 = ssub.s32 %s19, %s26
    %s33 = sor.u32 %s31, %s32
    %p34 = scmp.eq.s32.totalorder %s33, 0
    %s36 = sadd.s32 %s35, 1
    %s37 = scalar_select %p34, %s35, %s36
    %p40 = pneg %p34
    %p41 = scmp.eq.s32.totalorder %s11, 1
    %p42 = por %p40, %p41
    %p43 = scmp.ne.s32.totalorder %s35, %s38
    %p44 = scmp.eq.s32.totalorder %s11, 0
    %p45 = por %p43, %p44
    %p46 = scmp.ne.s32.totalorder %s35, %s38
    %p47 = scmp.eq.s32.totalorder %s16, 1
    %p48 = por %p46, %p47
    %p49 = scmp.ne.s32.totalorder %s38, %s39
    %p50 = scmp.eq.s32.totalorder %s16, 0
    %p51 = por %p49, %p50
    %p52 = scmp.ne.s32.totalorder %s38, %s39
    %p53 = scmp.eq.s32.totalorder %s17, 1
    %p54 = por %p52, %p53
    %p56 = scmp.ne.s32.totalorder %s39, %s55
    %p57 = scmp.eq.s32.totalorder %s17, 0
    %p58 = por %p56, %p57
    %s60 = sadd.s32 %s59, 1
    %p63 = scmp.eq.s32.totalorder %s11, 1
    %p64 = scmp.ne.s32.totalorder %s59, %s61
    %p65 = scmp.eq.s32.totalorder %s11, 0
    %p66 = por %p64, %p65
    %p67 = scmp.ne.s32.totalorder %s59, %s61
    %p68 = scmp.eq.s32.totalorder %s16, 1
    %p69 = por %p67, %p68
    %p70 = scmp.ne.s32.totalorder %s61, %s62
    %p71 = scmp.eq.s32.totalorder %s16, 0
    %p72 = por %p70, %p71
    %p73 = scmp.ne.s32.totalorder %s61, %s62
    %p74 = scmp.eq.s32.totalorder %s17, 1
    %p75 = por %p73, %p74
    %p77 = scmp.ne.s32.totalorder %s62, %s76
    %p78 = scmp.eq.s32.totalorder %s17, 0
    %p79 = por %p77, %p78
    %s81 = sadd.s32 %s80, 1
    %p84 = scmp.eq.s32.totalorder %s11, 1
    %p85 = scmp.ne.s32.totalorder %s80, %s82
    %p86 = scmp.eq.s32.totalorder %s11, 0
    %p87 = por %p85, %p86
    %p88 = scmp.ne.s32.totalorder %s80, %s82
    %p89 = scmp.eq.s32.totalorder %s16, 1
    %p90 = por %p88, %p89
    %p91 = scmp.ne.s32.totalorder %s82, %s83
    %p92 = scmp.eq.s32.totalorder %s16, 0
    %p93 = por %p91, %p92
    %p94 = scmp.ne.s32.totalorder %s82, %s83
    %p95 = scmp.eq.s32.totalorder %s17, 1
    %p96 = por %p94, %p95
    %p98 = scmp.ne.s32.totalorder %s83, %s97
    %p99 = scmp.eq.s32.totalorder %s17, 0
    %p100 = por %p98, %p99
    %s102 = sadd.s32 %s101, 1
    %p105 = scmp.eq.s32.totalorder %s11, 1
    %p106 = scmp.ne.s32.totalorder %s101, %s103
    %p107 = scmp.eq.s32.totalorder %s11, 0
    %p108 = por %p106, %p107
    %p109 = scmp.ne.s32.totalorder %s101, %s103
    %p110 = scmp.eq.s32.totalorder %s16, 1
    %p111 = por %p109, %p110
    %p112 = scmp.ne.s32.totalorder %s103, %s104
    %p113 = scmp.eq.s32.totalorder %s16, 0
    %p114 = por %p112, %p113
    %p115 = scmp.ne.s32.totalorder %s103, %s104
    %p116 = scmp.eq.s32.totalorder %s17, 1
    %p117 = por %p115, %p116
    %p119 = scmp.ne.s32.totalorder %s104, %s118
    %p120 = scmp.eq.s32.totalorder %s17, 0
    %p121 = por %p119, %p120
    %s123 = sadd.s32 %s122, 1
    %p126 = scmp.eq.s32.totalorder %s11, 1
    %p127 = scmp.ne.s32.totalorder %s122, %s124
    %p128 = scmp.eq.s32.totalorder %s11, 0
    %p129 = por %p127, %p128
    %p130 = scmp.ne.s32.totalorder %s122, %s124
    %p131 = scmp.eq.s32.totalorder %s16, 1
    %p132 = por %p130, %p131
    %p133 = scmp.ne.s32.totalorder %s124, %s125
    %p134 = scmp.eq.s32.totalorder %s16, 0
    %p135 = por %p133, %p134
    %p136 = scmp.ne.s32.totalorder %s124, %s125
    %p137 = scmp.eq.s32.totalorder %s17, 1
    %p138 = por %p136, %p137
    %p140 = scmp.ne.s32.totalorder %s125, %s139
    %p141 = scmp.eq.s32.totalorder %s17, 0
    %p142 = por %p140, %p141
    %s143 = ssub.s32 %s18, %s30
    %s144 = ssub.s32 %s19, %s26
    %s145 = sor.u32 %s143, %s144
    %p146 = scmp.eq.s32.totalorder %s145, 0
    %s148 = sadd.s32 %s147, 1
    %s149 = scalar_select %p146, %s147, %s148
    %p152 = pneg %p146
    %p153 = scmp.eq.s32.totalorder %s11, 1
    %p154 = por %p152, %p153
    %p155 = scmp.ne.s32.totalorder %s147, %s150
    %p156 = scmp.eq.s32.totalorder %s11, 0
    %p157 = por %p155, %p156
    %p158 = scmp.ne.s32.totalorder %s147, %s150
    %p159 = scmp.eq.s32.totalorder %s16, 1
    %p160 = por %p158, %p159
    %p161 = scmp.ne.s32.totalorder %s150, %s151
    %p162 = scmp.eq.s32.totalorder %s16, 0
    %p163 = por %p161, %p162
    %p164 = scmp.ne.s32.totalorder %s150, %s151
    %p165 = scmp.eq.s32.totalorder %s17, 1
    %p166 = por %p164, %p165
    %p168 = scmp.ne.s32.totalorder %s151, %s167
    %p169 = scmp.eq.s32.totalorder %s17, 0
    %p170 = por %p168, %p169
    %p171 = scmp.le.s32.totalorder 1, %s11
    %p172 = scmp.lt.s32.totalorder %s11, 3
    %p173 = pnand %p171, %p172
    %p174 = pneg %p173
    // Predicated region
    $region9: #{residual_conv2d_block.1} parent=5 // pred_check
      _
    $region10: #{residual_conv2d_block.1} parent=5 // pred_check_branch
      %176 = sbr.rel (%p173) target = $region12
    $region11: #{residual_conv2d_block.1} parent=5 // pred_region
      %s177 = ssub.s32 %s11, 1
      // Predicated region
      $region13: #{residual_conv2d_block.1} parent=11 // pred_check
        %p178 = pneg %p72
      $region14: #{residual_conv2d_block.1} parent=11 // pred_check_branch
        %180 = sbr.rel (%p178) target = $region16
      $region15: #{residual_conv2d_block.1} parent=11 // pred_region
        _
      $region16: #{residual_conv2d_block.1} parent=11 // pred_fallthru
        _
      // Predicated region
      $region17: #{residual_conv2d_block.1} parent=11 // pred_check
        %p181 = pneg %p93
      $region18: #{residual_conv2d_block.1} parent=11 // pred_check_branch
        %183 = sbr.rel (%p181) target = $region20
      $region19: #{residual_conv2d_block.1} parent=11 // pred_region
        _
      $region20: #{residual_conv2d_block.1} parent=11 // pred_fallthru
        _
      // Predicated region
      $region21: #{residual_conv2d_block.1} parent=11 // pred_check
        %p184 = pneg %p114
      $region22: #{residual_conv2d_block.1} parent=11 // pred_check_branch
        %186 = sbr.rel (%p184) target = $region24
      $region23: #{residual_conv2d_block.1} parent=11 // pred_region
        _
      $region24: #{residual_conv2d_block.1} parent=11 // pred_fallthru
        _
      // Predicated region
      $region25: #{residual_conv2d_block.1} parent=11 // pred_check
        %p187 = pneg %p135
      $region26: #{residual_conv2d_block.1} parent=11 // pred_check_branch
        %189 = sbr.rel (%p187) target = $region28
      $region27: #{residual_conv2d_block.1} parent=11 // pred_region
        _
      $region28: #{residual_conv2d_block.1} parent=11 // pred_fallthru
        _
    $region12: #{residual_conv2d_block.1} parent=5 // pred_fallthru
      _
    %p190 = scmp.lt.s32.totalorder %s11, 2
    // Predicated region
    $region29: #{residual_conv2d_block.1} parent=5 // pred_check
      %p191 = pneg %p190
    $region30: #{residual_conv2d_block.1} parent=5 // pred_check_branch
      %193 = sbr.rel (%p191) target = $region32
    $region31: #{residual_conv2d_block.1} parent=5 // pred_region
      // Predicated region
      $region33: #{residual_conv2d_block.1} parent=31 // pred_check
        %p194 = pneg %p45
      $region34: #{residual_conv2d_block.1} parent=31 // pred_check_branch
        %196 = sbr.rel (%p194) target = $region36
      $region35: #{residual_conv2d_block.1} parent=31 // pred_region
        %s197 = smul.u32 2, %s19
        %p198 = scmp.lt.s32.totalorder %s18, 1
        %s199 = scalar_select %p198, %s18, 1
        %p200 = scmp.lt.s32.totalorder %s197, 1
        %s201 = scalar_select %p200, %s197, 1
        %s202 = smul.addr %s199, 8
        %s203 = sadd.s32 %s201, %s202
        %s204 = smul.addr %s203, 8
        %s205 = scalar_lea.vmem %s0, %s204
        %s206 = smul.u32 2, %s19
      $region36: #{residual_conv2d_block.1} parent=31 // pred_fallthru
        _
    $region32: #{residual_conv2d_block.1} parent=5 // pred_fallthru
      _
    %p207 = scmp.le.s32.totalorder 1, %s11
    %p208 = scmp.lt.s32.totalorder %s11, 3
    %p209 = pnand %p207, %p208
    %p210 = pneg %p209
    // Predicated region
    $region37: #{residual_conv2d_block.1} parent=5 // pred_check
      _
    $region38: #{residual_conv2d_block.1} parent=5 // pred_check_branch
      %212 = sbr.rel (%p209) target = $region40
    $region39: #{residual_conv2d_block.1} parent=5 // pred_region
      %s213 = ssub.s32 %s11, 1
      %s214 = smul.u32 2, %s21
      %p215 = scmp.lt.s32.totalorder %s20, 1
      %s216 = scalar_select %p215, %s20, 1
      %p217 = scmp.lt.s32.totalorder %s214, 1
      %s218 = scalar_select %p217, %s214, 1
      %s219 = smul.addr %s216, 8
      %s220 = sadd.s32 %s218, %s219
      %s221 = smul.addr %s220, 8
      %s222 = scalar_lea.vmem %s0, %s221
      %p223 = pneg %p51
      %p224 = pneg %p48
      %p225 = pneg %p72
      %p226 = pneg %p69
      %p227 = pneg %p93
      %p228 = pneg %p90
      %p229 = pneg %p114
      %p230 = pneg %p111
      %p231 = pneg %p135
      %p232 = pneg %p132
      %p233 = pneg %p163
      %p234 = pneg %p160
      %s235 = smul.u32 2, %s21
      %p236 = scmp.lt.s32.totalorder %s20, 1
      %s237 = scalar_select %p236, %s20, 1
      %p238 = scmp.lt.s32.totalorder %s235, 1
      %s239 = scalar_select %p238, %s235, 1
      %s240 = smul.addr %s237, 2
      %s241 = sadd.s32 %s239, %s240
      %s242 = smul.addr %s241, 8
      %s243 = scalar_lea.vmem %s5, %s242
      %s244 = smul.u32 2, %s21
      %p245 = scmp.lt.s32.totalorder %s20, 1
      %s246 = scalar_select %p245, %s20, 1
      %p247 = scmp.lt.s32.totalorder %s244, 1
      %s248 = scalar_select %p247, %s244, 1
      %s249 = smul.addr %s246, 8
      %s250 = sadd.s32 %s248, %s249
      %s251 = smul.addr %s250, 8
      %s252 = scalar_lea.vmem %s0, %s251
      %s253 = smul.u32 2, %s21
      %s254 = smul.u32 2, %s21
      %p255 = scmp.lt.s32.totalorder %s20, 1
      %s256 = scalar_select %p255, %s20, 1
      %p257 = scmp.lt.s32.totalorder %s254, 1
      %s258 = scalar_select %p257, %s254, 1
      %s259 = smul.addr %s256, 2
      %s260 = sadd.s32 %s258, %s259
      %s261 = smul.addr %s260, 8
      %s262 = scalar_lea.vmem %s5, %s261
      %s263 = smul.u32 2, %s21
      %v264 = vld [vmem:[%s252] sm:$0xff]
      %v265 = vld [vmem:[%s252 + $0x8] sm:$0xff]
      %v266 = vld [vmem:[%s1] sm:$0xff]
      %v267 = vld [vmem:[%s1 + $0x8] sm:$0xff]
      %v268 = vld [vmem:[%s1 + $0x10] sm:$0xff]
      %v269 = vld [vmem:[%s1 + $0x18] sm:$0xff]
      %s270 = scalar_lea.vmem %s252, 16
      %v271 = vld [vmem:[%s270] sm:$0xff]
      %v272 = vld [vmem:[%s270 + $0x8] sm:$0xff]
      %s273 = scalar_lea.vmem %s1, 32
      %v274 = vld [vmem:[%s273] sm:$0xff]
      %v275 = vld [vmem:[%s273 + $0x8] sm:$0xff]
      %v276 = vld [vmem:[%s273 + $0x10] sm:$0xff]
      %v277 = vld [vmem:[%s273 + $0x18] sm:$0xff]
      %vm278 = vcmask 130048
      %v280 = vsel %vm278, %v271, 0
      %v283 = vsel %vm278, %v272, 0
      %285 = vmatpush.msra.mxu0 0.0
      %286 = vmatpush.msra.mxu0 0.0
      %287 = vmatpush.msra.mxu0 0.0
      %288 = vmatpush.msra.mxu0 0.0
      %289 = vmatpush.msra.mxu0 0.0
      %290 = vmatpush.msra.mxu0 0.0
      %291 = vmatpush.msra.mxu0 0.0
      %292 = vmatpush.msra.mxu0 0.0
      %293 = vmatpush.msra.mxu0 0.0
      %294 = vmatpush.msra.mxu0 0.0
      %295 = vmatpush.msra.mxu0 0.0
      %296 = vmatpush.msra.mxu0 0.0
      %297 = vmatpush.msra.mxu0 0.0
      %298 = vmatpush.msra.mxu0 0.0
      %299 = vmatpush.msra.mxu0 %v276
      %300 = vmatpush.msra.mxu0 %v274
      %301 = vmatmul.f32.gmra.mxu0 %v280
      %v302 = vpop.f32.mrf.mxu0
      %v303 = vadd.f32 0.0, %v302
      %304 = vmatmul.f32.gmra.mxu0 %v283
      %v305 = vpop.f32.mrf.mxu0
      %v306 = vadd.f32 0.0, %v305
      %307 = vdwg.mxu0
      %308 = vmatpush.msra.mxu0 0.0
      %309 = vmatpush.msra.mxu0 0.0
      %310 = vmatpush.msra.mxu0 0.0
      %311 = vmatpush.msra.mxu0 0.0
      %312 = vmatpush.msra.mxu0 0.0
      %313 = vmatpush.msra.mxu0 0.0
      %314 = vmatpush.msra.mxu0 0.0
      %315 = vmatpush.msra.mxu0 0.0
      %316 = vmatpush.msra.mxu0 0.0
      %317 = vmatpush.msra.mxu0 0.0
      %318 = vmatpush.msra.mxu0 0.0
      %319 = vmatpush.msra.mxu0 0.0
      %320 = vmatpush.msra.mxu0 0.0
      %321 = vmatpush.msra.mxu0 0.0
      %322 = vmatpush.msra.mxu0 %v277
      %323 = vmatpush.msra.mxu0 %v275
      %324 = vmatmul.f32.gmra.mxu0 %v280
      %v325 = vpop.f32.mrf.mxu0
      %v326 = vadd.f32 0.0, %v325
      %327 = vmatmul.f32.gmra.mxu0 %v283
      %v328 = vpop.f32.mrf.mxu0
      %v329 = vadd.f32 0.0, %v328
      %330 = vdwg.mxu0
      %v332 = vsel %vm278, %v264, 0
      %v335 = vsel %vm278, %v265, 0
      %337 = vmatpush.msra.mxu0 0.0
      %338 = vmatpush.msra.mxu0 0.0
      %339 = vmatpush.msra.mxu0 0.0
      %340 = vmatpush.msra.mxu0 0.0
      %341 = vmatpush.msra.mxu0 0.0
      %342 = vmatpush.msra.mxu0 0.0
      %343 = vmatpush.msra.mxu0 0.0
      %344 = vmatpush.msra.mxu0 0.0
      %345 = vmatpush.msra.mxu0 0.0
      %346 = vmatpush.msra.mxu0 0.0
      %347 = vmatpush.msra.mxu0 0.0
      %348 = vmatpush.msra.mxu0 0.0
      %349 = vmatpush.msra.mxu0 0.0
      %350 = vmatpush.msra.mxu0 0.0
      %351 = vmatpush.msra.mxu0 %v268
      %352 = vmatpush.msra.mxu0 %v266
      %353 = vmatmul.f32.gmra.mxu0 %v332
      %v354 = vpop.f32.mrf.mxu0
      %v355 = vadd.f32 %v303, %v354
      %356 = vmatmul.f32.gmra.mxu0 %v335
      %v357 = vpop.f32.mrf.mxu0
      %v358 = vadd.f32 %v306, %v357
      %359 = vdwg.mxu0
      %360 = vmatpush.msra.mxu0 0.0
      %361 = vmatpush.msra.mxu0 0.0
      %362 = vmatpush.msra.mxu0 0.0
      %363 = vmatpush.msra.mxu0 0.0
      %364 = vmatpush.msra.mxu0 0.0
      %365 = vmatpush.msra.mxu0 0.0
      %366 = vmatpush.msra.mxu0 0.0
      %367 = vmatpush.msra.mxu0 0.0
      %368 = vmatpush.msra.mxu0 0.0
      %369 = vmatpush.msra.mxu0 0.0
      %370 = vmatpush.msra.mxu0 0.0
      %371 = vmatpush.msra.mxu0 0.0
      %372 = vmatpush.msra.mxu0 0.0
      %373 = vmatpush.msra.mxu0 0.0
      %374 = vmatpush.msra.mxu0 %v269
      %375 = vmatpush.msra.mxu0 %v267
      %376 = vmatmul.f32.gmra.mxu0 %v332
      %v377 = vpop.f32.mrf.mxu0
      %v378 = vadd.f32 %v326, %v377
      %379 = vmatmul.f32.gmra.mxu0 %v335
      %v380 = vpop.f32.mrf.mxu0
      %v381 = vadd.f32 %v329, %v380
      %382 = vdwg.mxu0
      %s383 = scalar_lea.vmem %s252, 32
      %v384 = vld [vmem:[%s383] sm:$0xff]
      %v385 = vld [vmem:[%s383 + $0x8] sm:$0xff]
      %s386 = scalar_lea.vmem %s1, 64
      %v387 = vld [vmem:[%s386] sm:$0xff]
      %v388 = vld [vmem:[%s386 + $0x8] sm:$0xff]
      %v389 = vld [vmem:[%s386 + $0x10] sm:$0xff]
      %v390 = vld [vmem:[%s386 + $0x18] sm:$0xff]
      %v392 = vsel %vm278, %v384, 0
      %v395 = vsel %vm278, %v385, 0
      %397 = vmatpush.msra.mxu0 0.0
      %398 = vmatpush.msra.mxu0 0.0
      %399 = vmatpush.msra.mxu0 0.0
      %400 = vmatpush.msra.mxu0 0.0
      %401 = vmatpush.msra.mxu0 0.0
      %402 = vmatpush.msra.mxu0 0.0
      %403 = vmatpush.msra.mxu0 0.0
      %404 = vmatpush.msra.mxu0 0.0
      %405 = vmatpush.msra.mxu0 0.0
      %406 = vmatpush.msra.mxu0 0.0
      %407 = vmatpush.msra.mxu0 0.0
      %408 = vmatpush.msra.mxu0 0.0
      %409 = vmatpush.msra.mxu0 0.0
      %410 = vmatpush.msra.mxu0 0.0
      %411 = vmatpush.msra.mxu0 %v389
      %412 = vmatpush.msra.mxu0 %v387
      %413 = vmatmul.f32.gmra.mxu0 %v392
      %v414 = vpop.f32.mrf.mxu0
      %v415 = vadd.f32 0.0, %v414
      %416 = vmatmul.f32.gmra.mxu0 %v395
      %v417 = vpop.f32.mrf.mxu0
      %v418 = vadd.f32 0.0, %v417
      %419 = vdwg.mxu0
      %420 = vmatpush.msra.mxu0 0.0
      %421 = vmatpush.msra.mxu0 0.0
      %422 = vmatpush.msra.mxu0 0.0
      %423 = vmatpush.msra.mxu0 0.0
      %424 = vmatpush.msra.mxu0 0.0
      %425 = vmatpush.msra.mxu0 0.0
      %426 = vmatpush.msra.mxu0 0.0
      %427 = vmatpush.msra.mxu0 0.0
      %428 = vmatpush.msra.mxu0 0.0
      %429 = vmatpush.msra.mxu0 0.0
      %430 = vmatpush.msra.mxu0 0.0
      %431 = vmatpush.msra.mxu0 0.0
      %432 = vmatpush.msra.mxu0 0.0
      %433 = vmatpush.msra.mxu0 0.0
      %434 = vmatpush.msra.mxu0 %v390
      %435 = vmatpush.msra.mxu0 %v388
      %436 = vmatmul.f32.gmra.mxu0 %v392
      %v437 = vpop.f32.mrf.mxu0
      %v438 = vadd.f32 0.0, %v437
      %439 = vmatmul.f32.gmra.mxu0 %v395
      %v440 = vpop.f32.mrf.mxu0
      %v441 = vadd.f32 0.0, %v440
      %442 = vdwg.mxu0
      %v443 = vadd.f32 %v355, %v415
      %v444 = vadd.f32 %v378, %v438
      %v445 = vadd.f32 %v358, %v418
      %v446 = vadd.f32 %v381, %v441
      %s447 = scalar_lea.vmem %s252, 48
      %v448 = vld [vmem:[%s447] sm:$0xff]
      %v449 = vld [vmem:[%s447 + $0x8] sm:$0xff]
      %s450 = scalar_lea.vmem %s1, 96
      %v451 = vld [vmem:[%s450] sm:$0xff]
      %v452 = vld [vmem:[%s450 + $0x8] sm:$0xff]
      %v453 = vld [vmem:[%s450 + $0x10] sm:$0xff]
      %v454 = vld [vmem:[%s450 + $0x18] sm:$0xff]
      %v456 = vsel %vm278, %v448, 0
      %v459 = vsel %vm278, %v449, 0
      %461 = vmatpush.msra.mxu0 0.0
      %462 = vmatpush.msra.mxu0 0.0
      %463 = vmatpush.msra.mxu0 0.0
      %464 = vmatpush.msra.mxu0 0.0
      %465 = vmatpush.msra.mxu0 0.0
      %466 = vmatpush.msra.mxu0 0.0
      %467 = vmatpush.msra.mxu0 0.0
      %468 = vmatpush.msra.mxu0 0.0
      %469 = vmatpush.msra.mxu0 0.0
      %470 = vmatpush.msra.mxu0 0.0
      %471 = vmatpush.msra.mxu0 0.0
      %472 = vmatpush.msra.mxu0 0.0
      %473 = vmatpush.msra.mxu0 0.0
      %474 = vmatpush.msra.mxu0 0.0
      %475 = vmatpush.msra.mxu0 %v453
      %476 = vmatpush.msra.mxu0 %v451
      %477 = vmatmul.f32.gmra.mxu0 %v456
      %v478 = vpop.f32.mrf.mxu0
      %v479 = vadd.f32 0.0, %v478
      %480 = vmatmul.f32.gmra.mxu0 %v459
      %v481 = vpop.f32.mrf.mxu0
      %v482 = vadd.f32 0.0, %v481
      %483 = vdwg.mxu0
      %484 = vmatpush.msra.mxu0 0.0
      %485 = vmatpush.msra.mxu0 0.0
      %486 = vmatpush.msra.mxu0 0.0
      %487 = vmatpush.msra.mxu0 0.0
      %488 = vmatpush.msra.mxu0 0.0
      %489 = vmatpush.msra.mxu0 0.0
      %490 = vmatpush.msra.mxu0 0.0
      %491 = vmatpush.msra.mxu0 0.0
      %492 = vmatpush.msra.mxu0 0.0
      %493 = vmatpush.msra.mxu0 0.0
      %494 = vmatpush.msra.mxu0 0.0
      %495 = vmatpush.msra.mxu0 0.0
      %496 = vmatpush.msra.mxu0 0.0
      %497 = vmatpush.msra.mxu0 0.0
      %498 = vmatpush.msra.mxu0 %v454
      %499 = vmatpush.msra.mxu0 %v452
      %500 = vmatmul.f32.gmra.mxu0 %v456
      %v501 = vpop.f32.mrf.mxu0
      %v502 = vadd.f32 0.0, %v501
      %503 = vmatmul.f32.gmra.mxu0 %v459
      %v504 = vpop.f32.mrf.mxu0
      %v505 = vadd.f32 0.0, %v504
      %506 = vdwg.mxu0
      %v507 = vadd.f32 %v443, %v479
      %v508 = vadd.f32 %v444, %v502
      %v509 = vadd.f32 %v445, %v482
      %v510 = vadd.f32 %v446, %v505
      %v511 = vld [vmem:[%s2] sm:$0x3]
      %v513 = vperm.slane %v511, 0
      %v514 = vperm.slane %v511, 1
      %v517 = vadd.f32 %v507, %v513
      %v518 = vadd.f32 %v508, %v514
      %v519 = vadd.f32 %v509, %v513
      %v520 = vadd.f32 %v510, %v514
      %v521 = vmax.f32 %v517, 0.0
      %v522 = vmax.f32 %v519, 0.0
      %v523 = vadd.f32 %v521, %v518
      %v524 = vadd.f32 %v522, %v520
      %v525 = vld [vmem:[%s3] sm:$0xff]
      %v526 = vld [vmem:[%s3 + $0x8] sm:$0xff]
      %v527 = vld [vmem:[%s3 + $0x10] sm:$0xff]
      %v528 = vld [vmem:[%s3 + $0x18] sm:$0xff]
      %v529 = vld [vmem:[%s3 + $0x20] sm:$0xff]
      %v530 = vld [vmem:[%s3 + $0x28] sm:$0xff]
      %v531 = vld [vmem:[%s3 + $0x30] sm:$0xff]
      %v532 = vld [vmem:[%s3 + $0x38] sm:$0xff]
      %v533 = vld [vmem:[%s3 + $0x40] sm:$0xff]
      %v534 = vld [vmem:[%s3 + $0x48] sm:$0xff]
      %v535 = vld [vmem:[%s3 + $0x50] sm:$0xff]
      %v536 = vld [vmem:[%s3 + $0x58] sm:$0xff]
      %v537 = vld [vmem:[%s3 + $0x60] sm:$0xff]
      %v538 = vld [vmem:[%s3 + $0x68] sm:$0xff]
      %v539 = vld [vmem:[%s3 + $0x70] sm:$0xff]
      %v540 = vld [vmem:[%s3 + $0x78] sm:$0xff]
      %v541 = vld [vmem:[%s4] sm:$0x1]
      %v543 = vperm.slane %v541, 0
      %545 = vmatpush.msra.mxu0 %v540
      %546 = vmatpush.msra.mxu0 %v539
      %547 = vmatpush.msra.mxu0 %v538
      %548 = vmatpush.msra.mxu0 %v537
      %549 = vmatpush.msra.mxu0 %v536
      %550 = vmatpush.msra.mxu0 %v535
      %551 = vmatpush.msra.mxu0 %v534
      %552 = vmatpush.msra.mxu0 %v533
      %553 = vmatpush.msra.mxu0 %v532
      %554 = vmatpush.msra.mxu0 %v531
      %555 = vmatpush.msra.mxu0 %v530
      %556 = vmatpush.msra.mxu0 %v529
      %557 = vmatpush.msra.mxu0 %v528
      %558 = vmatpush.msra.mxu0 %v527
      %559 = vmatpush.msra.mxu0 %v526
      %560 = vmatpush.msra.mxu0 %v525
      %561 = vmatmul.f32.gmra.mxu0 %v523
      %v562 = vpop.f32.mrf.mxu0
      %v563 = vadd.f32 %v543, %v562
      %564 = vmatmul.f32.gmra.mxu0 %v524
      %v565 = vpop.f32.mrf.mxu0
      %v566 = vadd.f32 %v543, %v565
      %567 = vdwg.mxu0
      %v568 = vmax.f32 %v563, 0.0
      %v569 = vmax.f32 %v566, 0.0
      %v570 = vadd.f32 %v568, %v523
      %v571 = vadd.f32 %v569, %v524
      %572 = vst [vmem:[%s262] sm:$0xff] %v570
      %573 = vst [vmem:[%s262 + $0x8] sm:$0xff] %v571
      %s574 = smul.u32 2, %s21
      %p575 = scmp.lt.s32.totalorder %s20, 1
      %s576 = scalar_select %p575, %s20, 1
      %p577 = scmp.lt.s32.totalorder %s574, 1
      %s578 = scalar_select %p577, %s574, 1
      %s579 = smul.addr %s576, 2
      %s580 = sadd.s32 %s578, %s579
      %s581 = smul.addr %s580, 8
      %s582 = scalar_lea.vmem %s5, %s581
      // Predicated region
      $region41: #{residual_conv2d_block.1} parent=39 // pred_check
        %p583 = pneg %p160
      $region42: #{residual_conv2d_block.1} parent=39 // pred_check_branch
        %585 = sbr.rel (%p583) target = $region44
      $region43: #{residual_conv2d_block.1} parent=39 // pred_region
        %s586 = smul.u32 2, %s21
      $region44: #{residual_conv2d_block.1} parent=39 // pred_fallthru
        _
    $region40: #{residual_conv2d_block.1} parent=5 // pred_fallthru
      _
    %p587 = scmp.le.s32.totalorder 2, %s11
    // Predicated region
    $region45: #{residual_conv2d_block.1} parent=5 // pred_check
      %p588 = pneg %p587
    $region46: #{residual_conv2d_block.1} parent=5 // pred_check_branch
      %590 = sbr.rel (%p588) target = $region48
    $region47: #{residual_conv2d_block.1} parent=5 // pred_region
      %s591 = ssub.s32 %s11, 2
      // Predicated region
      $region49: #{residual_conv2d_block.1} parent=47 // pred_check
        %p592 = pneg %p166
      $region50: #{residual_conv2d_block.1} parent=47 // pred_check_branch
        %594 = sbr.rel (%p592) target = $region52
      $region51: #{residual_conv2d_block.1} parent=47 // pred_region
        %s595 = smul.u32 2, %s23
        %p596 = scmp.lt.s32.totalorder %s22, 1
        %s597 = scalar_select %p596, %s22, 1
        %p598 = scmp.lt.s32.totalorder %s595, 1
        %s599 = scalar_select %p598, %s595, 1
        %s600 = smul.addr %s597, 2
        %s601 = sadd.s32 %s599, %s600
        %s602 = smul.addr %s601, 8
        %s603 = scalar_lea.vmem %s5, %s602
      $region52: #{residual_conv2d_block.1} parent=47 // pred_fallthru
        _
    $region48: #{residual_conv2d_block.1} parent=5 // pred_fallthru
      _
  $region6: #{residual_conv2d_block.1} parent=0 // loop_footer
    %s15 = sadd.s32 1, %s11
  $region7: #{residual_conv2d_block.1} parent=0 // loop_footer_branch
    %10 = sbr.rel target = $region3
  $region8: #{residual_conv2d_block.1} parent=0 // loop_exit
    _

</llo_original>
